<compile_context>
chip_gen: v7x
topology: tpu7x:2x2x1
jax: 0.10.0
libtpu: 0.0.40
codegen_flags: <defaults>
</compile_context>

<pallas_src>
import math

import jax
import jax.numpy as jnp
from jax.experimental import pallas as pl
from jax.experimental.pallas import tpu as pltpu


def _cdiv(a, b):
    return -(-a // b)


def _round_up(x, m):
    return _cdiv(x, m) * m


def _make_kernel(tk, compute_dtype):
    def kernel(x_ref, w1_ref, b1_ref, w2_ref, b2_ref, o_ref, acc_ref):
        """grid = (batch_tiles, k_tiles); acc_ref holds the fc1 f32 partial sums."""
        k = pl.program_id(1)

        @pl.when(k == 0)
        def _init():
            # Fold b1 into the accumulator init (saves one (tb,128) VPU pass
            # and a live f32 temp in the epilogue).
            acc_ref[...] = jnp.broadcast_to(b1_ref[...], acc_ref.shape)

        # fc1 partial matmul on the MXU with f32 accumulation.  W1 is a single
        # resident VMEM block (fetched once, never re-streamed across batch
        # tiles); slice the current K slab in-kernel.
        k0 = pl.multiple_of(k * tk, tk)
        x_tile = x_ref[...].astype(compute_dtype)   # in-kernel cast: no HBM pass
        w1_slab = w1_ref[pl.ds(k0, tk), :]
        acc_ref[...] += jnp.dot(x_tile, w1_slab,
                                preferred_element_type=jnp.float32)

        @pl.when(k == pl.num_programs(1) - 1)
        def _fini():
            # Epilogue in f32 (v5e-friendly: no bf16 VPU work), then fc2 on
            # the MXU with a lane-dense (multiple-of-128) output store.
            h = jnp.maximum(acc_ref[...], 0.0)       # bias already folded in
            y = jnp.dot(h.astype(compute_dtype), w2_ref[...],
                        preferred_element_type=jnp.float32)
            o_ref[...] = (y + b2_ref[...]).astype(o_ref.dtype)

    return kernel


def classifier_forward(x, w1, b1, w2, b2, *,
                       compute_dtype=jnp.bfloat16, tb=None, tk=None,
                       vmem_limit_bytes=None):
    """Fused fc1 -> ReLU -> fc2 Pallas kernel.

    x:  (B, C, H, W) (any trailing shape; flattened row-major like torch .view)
    w1: (D, hidden), b1: (hidden,)
    w2: (hidden, num_classes), b2: (num_classes,)
    returns (B, num_classes) float32

    compute_dtype controls MXU input precision only (accumulation and the
    bias/ReLU epilogue are always f32).  bf16 (default) halves the W1 stream
    and uses the native bf16 MXU on every generation; use jnp.float32 for
    bit-compatible-with-torch semantics.
    """
    B = x.shape[0]
    D, hidden = w1.shape
    num_classes = w2.shape[1]
    assert math.prod(x.shape[1:]) == D, "w1 first dim must equal prod(x.shape[1:])"

    # --- flatten (free: no data movement), keep x's own dtype in HBM --------
    x2d = jnp.reshape(x, (B, D))

    # --- padding targets -----------------------------------------------------
    D_pad = _round_up(D, 128)            # K padding decoupled from tk (<~6% waste)
    H_pad = _round_up(hidden, 128)       # hidden = 128 for this module
    N_pad = _round_up(num_classes, 128)  # lane-dense output store (unmasked vst)

    # --- tk: largest multiple-of-128 divisor of D_pad, capped at 2048 -------
    if tk is None:
        m = D_pad // 128
        g_cap = min(m, 2048 // 128)
        g = max(g for g in range(1, g_cap + 1) if m % g == 0)
        tk = g * 128
    assert tk % 128 == 0 and D_pad % tk == 0

    # --- tb: cap 256; >=2 tiles when splittable (v7x dual-TC); sublane-8 ----
    if tb is None:
        nb = _cdiv(B, 256)
        if nb == 1 and B >= 64:
            nb = 2                       # give both v7x TensorCores a batch tile
        tb = _round_up(_cdiv(B, nb), 8)
    tb = max(8, _round_up(tb, 8))
    B_pad = _round_up(B, tb)

    # --- single pad pass over x, only if actually needed ---------------------
    if B_pad != B or D_pad != D:
        x2d = jnp.pad(x2d, ((0, B_pad - B), (0, D_pad - D)))

    # Weights/biases are tiny relative to x: cast/pad them in the wrapper.
    w1c = jnp.pad(w1.astype(compute_dtype),
                  ((0, D_pad - D), (0, H_pad - hidden)))
    w2c = jnp.pad(w2.astype(compute_dtype),
                  ((0, H_pad - hidden), (0, N_pad - num_classes)))
    b1p = jnp.pad(b1.astype(jnp.float32), (0, H_pad - hidden)).reshape(1, H_pad)
    b2p = jnp.pad(b2.astype(jnp.float32),
                  (0, N_pad - num_classes)).reshape(1, N_pad)

    grid = (B_pad // tb, D_pad // tk)

    # --- VMEM budget: derive from the actual tile footprint ------------------
    if vmem_limit_bytes is None:
        w_isz = jnp.dtype(compute_dtype).itemsize
        est = (2 * tb * tk * x2d.dtype.itemsize          # x tile, double-buffered
               + 2 * D_pad * H_pad * w_isz               # resident W1 (2 bufs)
               + 2 * H_pad * N_pad * w_isz               # resident W2
               + 2 * (H_pad + N_pad) * 4                 # biases
               + 2 * tb * N_pad * 4                      # output tile
               + tb * H_pad * 4)                         # f32 accumulator
        cap = 64 * 1024 * 1024                           # conservative (v7x)
        try:
            cap = int(pltpu.get_tpu_info().vmem_capacity_bytes)
        except Exception:
            pass
        want = max(32 * 1024 * 1024, int(est * 1.25) + (4 << 20))
        vmem_limit_bytes = max(16 << 20, min(cap - (8 << 20), want))

    out = pl.pallas_call(
        _make_kernel(tk, compute_dtype),
        out_shape=jax.ShapeDtypeStruct((B_pad, N_pad), jnp.float32),
        grid_spec=pltpu.PrefetchScalarGridSpec(
            num_scalar_prefetch=0,
            grid=grid,
            in_specs=[
                pl.BlockSpec((tb, tk), lambda i, k: (i, k)),          # x tile
                pl.BlockSpec((D_pad, H_pad), lambda i, k: (0, 0)),    # W1 resident
                pl.BlockSpec((1, H_pad), lambda i, k: (0, 0)),        # b1 resident
                pl.BlockSpec((H_pad, N_pad), lambda i, k: (0, 0)),    # W2 resident
                pl.BlockSpec((1, N_pad), lambda i, k: (0, 0)),        # b2 resident
            ],
            out_specs=pl.BlockSpec((tb, N_pad), lambda i, k: (i, 0)),
            scratch_shapes=[pltpu.VMEM((tb, H_pad), jnp.float32)],    # fc1 acc
        ),
        compiler_params=pltpu.CompilerParams(
            # batch axis parallel (megacore / v7x dual-TC), reduction last+arbitrary
            dimension_semantics=("parallel", "arbitrary"),
            vmem_limit_bytes=int(vmem_limit_bytes),
        ),
    )(x2d, w1c, b1p, w2c, b2p)

    return out[:B, :num_classes]


def _reference(x, w1, b1, w2, b2):
    x2d = x.reshape(x.shape[0], -1)
    h = jnp.maximum(
        jnp.dot(x2d, w1, precision=jax.lax.Precision.HIGHEST) + b1, 0.0)
    return jnp.dot(h, w2, precision=jax.lax.Precision.HIGHEST) + b2


if __name__ == "__main__":
    # ---- Small demo shapes consistent with the module's forward -----------
    # x is an NCHW activation tensor that gets flattened; input_size = C*H*W.
    B, C, H, W = 2, 4, 16, 16
    input_size = C * H * W        # 1024
    hidden = 128                  # fixed by the module (fc1 out features)
    num_classes = 10

    key = jax.random.PRNGKey(0)
    k_x, k_w1, k_b1, k_w2, k_b2, k_x2, k_w1b = jax.random.split(key, 7)

    x = jax.random.normal(k_x, (B, C, H, W), dtype=jnp.float32)

    bound1 = 1.0 / (input_size ** 0.5)
    w1 = jax.random.uniform(k_w1, (input_size, hidden), jnp.float32,
                            minval=-bound1, maxval=bound1)
    b1 = jax.random.uniform(k_b1, (hidden,), jnp.float32,
                            minval=-bound1, maxval=bound1)
    bound2 = 1.0 / (hidden ** 0.5)
    w2 = jax.random.uniform(k_w2, (hidden, num_classes), jnp.float32,
                            minval=-bound2, maxval=bound2)
    b2 = jax.random.uniform(k_b2, (num_classes,), jnp.float32,
                            minval=-bound2, maxval=bound2)

    ref = _reference(x, w1, b1, w2, b2)

    # f32 MXU-input path (matches the torch f32 module semantics).
    y_f32 = jax.block_until_ready(
        classifier_forward(x, w1, b1, w2, b2, compute_dtype=jnp.float32))
    assert y_f32.shape == (B, num_classes)
    assert jnp.allclose(y_f32, ref, atol=2e-3, rtol=2e-3), "f32 mismatch"

    # Default bf16 data-movement path (f32 accumulate + f32 epilogue).
    y_bf16 = jax.block_until_ready(classifier_forward(x, w1, b1, w2, b2))
    assert y_bf16.shape == (B, num_classes)
    assert jnp.allclose(y_bf16, ref, atol=1e-1, rtol=1e-1), "bf16 mismatch"

    # Exercise batch tiling + ragged batch padding + multi-step K reduction
    # with the resident-W1 in-kernel slicing: B2=72 (2 tiles of 40, 8 pad
    # rows), D2=2176=17*128 -> tk=128, 17 K steps.
    B2, C2, H2, W2s = 72, 17, 16, 8
    D2 = C2 * H2 * W2s
    xb = jax.random.normal(k_x2, (B2, C2, H2, W2s), dtype=jnp.float32)
    bound1b = 1.0 / (D2 ** 0.5)
    w1b = jax.random.uniform(k_w1b, (D2, hidden), jnp.float32,
                             minval=-bound1b, maxval=bound1b)
    yb = jax.block_until_ready(
        classifier_forward(xb, w1b, b1, w2, b2, compute_dtype=jnp.float32))
    refb = _reference(xb, w1b, b1, w2, b2)
    assert yb.shape == (B2, num_classes)
    assert jnp.allclose(yb, refb, atol=2e-3, rtol=2e-3), "tiled-grid mismatch"

    print("KERNEL_OK")
</pallas_src>

<mosaic_0001>
module attributes {stable_mosaic.version = 11 : i64} {
  func.func @kernel(%arg0: i32, %arg1: i32, %arg2: memref<8x1024xf32, #tpu.memory_space<vmem>>, %arg3: memref<1024x128xf32, #tpu.memory_space<vmem>>, %arg4: memref<1x128xf32, #tpu.memory_space<vmem>>, %arg5: memref<128x128xf32, #tpu.memory_space<vmem>>, %arg6: memref<1x128xf32, #tpu.memory_space<vmem>>, %arg7: memref<8x128xf32, #tpu.memory_space<vmem>>, %arg8: memref<8x128xf32, #tpu.memory_space<vmem>>) attributes {dimension_semantics = [#tpu.dimension_semantics<parallel>, #tpu.dimension_semantics<arbitrary>], iteration_bounds = array<i64: 1, 1>, scalar_prefetch = 0 : i64, scratch_operands = 1 : i64, tpu.core_type = #tpu.core_type<tc>, window_params = [{transform_indices = @transform_0, window_bounds = array<i64: 8, 1024>}, {pipeline_mode = #tpu.pipeline_mode<synchronous>, transform_indices = @transform_1, window_bounds = array<i64: 1024, 128>}, {pipeline_mode = #tpu.pipeline_mode<synchronous>, transform_indices = @transform_2, window_bounds = array<i64: 1, 128>}, {pipeline_mode = #tpu.pipeline_mode<synchronous>, transform_indices = @transform_3, window_bounds = array<i64: 128, 128>}, {pipeline_mode = #tpu.pipeline_mode<synchronous>, transform_indices = @transform_4, window_bounds = array<i64: 1, 128>}, {transform_indices = @transform_5, window_bounds = array<i64: 8, 128>}]} {
    %c0_i32 = arith.constant 0 : i32
    %0 = arith.cmpi eq, %arg1, %c0_i32 : i32
    %1 = arith.extui %0 : i1 to i32
    %c0_i32_0 = arith.constant 0 : i32
    %2 = arith.cmpi ne, %1, %c0_i32_0 : i32
    scf.if %2 {
      %c0_9 = arith.constant 0 : index
      %c0_10 = arith.constant 0 : index
      %15 = vector.load %arg4[%c0_9, %c0_10] : memref<1x128xf32, #tpu.memory_space<vmem>>, vector<1x128xf32>
      %16 = vector.shape_cast %15 : vector<1x128xf32> to vector<1x128xf32>
      %17 = vector.broadcast %16 : vector<1x128xf32> to vector<8x128xf32>
      %c0_11 = arith.constant 0 : index
      %c0_12 = arith.constant 0 : index
      %18 = vector.load %arg8[%c0_11, %c0_12] : memref<8x128xf32, #tpu.memory_space<vmem>>, vector<8x128xf32>
      tpu.vector_store %arg8[%c0_11, %c0_12], %17 {strides = array<i32>} : memref<8x128xf32, #tpu.memory_space<vmem>>, vector<8x128xf32>,
    } else {
    }
    %c1024_i32 = arith.constant 1024 : i32
    %3 = arith.muli %arg1, %c1024_i32 : i32
    %4 = tpu.assume_multiple %3, 1024 : i32
    %c0 = arith.constant 0 : index
    %c0_1 = arith.constant 0 : index
    %5 = vector.load %arg2[%c0, %c0_1] : memref<8x1024xf32, #tpu.memory_space<vmem>>, vector<8x1024xf32>
    %6 = arith.index_cast %4 : i32 to index
    %c0_2 = arith.constant 0 : index
    %7 = vector.load %arg3[%6, %c0_2] : memref<1024x128xf32, #tpu.memory_space<vmem>>, vector<1024x128xf32>
    %c0_3 = arith.constant 0 : index
    %c0_4 = arith.constant 0 : index
    %8 = vector.load %arg8[%c0_3, %c0_4] : memref<8x128xf32, #tpu.memory_space<vmem>>, vector<8x128xf32>
    %cst = arith.constant dense<0.000000e+00> : vector<8x128xf32>
    %9 = tpu.matmul %5, %7, %cst {dimension_numbers = #tpu.dot_dimension_numbers<[1], [0], [0], [1], [0, 0, 1, 1], [], []>} : vector<8x1024xf32>, vector<1024x128xf32>, vector<8x128xf32> -> vector<8x128xf32>
    %10 = arith.addf %8, %9 : vector<8x128xf32>
    %c0_5 = arith.constant 0 : index
    %c0_6 = arith.constant 0 : index
    %11 = vector.load %arg8[%c0_5, %c0_6] : memref<8x128xf32, #tpu.memory_space<vmem>>, vector<8x128xf32>
    tpu.vector_store %arg8[%c0_5, %c0_6], %10 {strides = array<i32>} : memref<8x128xf32, #tpu.memory_space<vmem>>, vector<8x128xf32>,
    %c0_i32_7 = arith.constant 0 : i32
    %12 = arith.cmpi eq, %arg1, %c0_i32_7 : i32
    %13 = arith.extui %12 : i1 to i32
    %c0_i32_8 = arith.constant 0 : i32
    %14 = arith.cmpi ne, %13, %c0_i32_8 : i32
    scf.if %14 {
      %c0_9 = arith.constant 0 : index
      %c0_10 = arith.constant 0 : index
      %15 = vector.load %arg8[%c0_9, %c0_10] : memref<8x128xf32, #tpu.memory_space<vmem>>, vector<8x128xf32>
      %cst_11 = arith.constant 0.000000e+00 : f32
      %16 = vector.broadcast %cst_11 : f32 to vector<8x128xf32>
      %17 = arith.maximumf %15, %16 : vector<8x128xf32>
      %c0_12 = arith.constant 0 : index
      %c0_13 = arith.constant 0 : index
      %18 = vector.load %arg5[%c0_12, %c0_13] : memref<128x128xf32, #tpu.memory_space<vmem>>, vector<128x128xf32>
      %cst_14 = arith.constant dense<0.000000e+00> : vector<8x128xf32>
      %19 = tpu.matmul %17, %18, %cst_14 {dimension_numbers = #tpu.dot_dimension_numbers<[1], [0], [0], [1], [0, 0, 1, 1], [], []>} : vector<8x128xf32>, vector<128x128xf32>, vector<8x128xf32> -> vector<8x128xf32>
      %c0_15 = arith.constant 0 : index
      %c0_16 = arith.constant 0 : index
      %20 = vector.load %arg6[%c0_15, %c0_16] : memref<1x128xf32, #tpu.memory_space<vmem>>, vector<1x128xf32>
      %21 = vector.broadcast %20 : vector<1x128xf32> to vector<8x128xf32>
      %22 = arith.addf %19, %21 : vector<8x128xf32>
      %c0_17 = arith.constant 0 : index
      %c0_18 = arith.constant 0 : index
      %23 = vector.load %arg7[%c0_17, %c0_18] : memref<8x128xf32, #tpu.memory_space<vmem>>, vector<8x128xf32>
      tpu.vector_store %arg7[%c0_17, %c0_18], %22 {strides = array<i32>} : memref<8x128xf32, #tpu.memory_space<vmem>>, vector<8x128xf32>,
    } else {
    }
    return
  }
  func.func @transform_0(%arg0: i32, %arg1: i32) -> (i32, i32) {
    %c0_i32 = arith.constant 0 : i32
    return %arg0, %arg1 : i32, i32
  }
  func.func @transform_1(%arg0: i32, %arg1: i32) -> (i32, i32) {
    %c0_i32 = arith.constant 0 : i32
    %c0_i32_0 = arith.constant 0 : i32
    %c0_i32_1 = arith.constant 0 : i32
    return %c0_i32, %c0_i32_0 : i32, i32
  }
  func.func @transform_2(%arg0: i32, %arg1: i32) -> (i32, i32) {
    %c0_i32 = arith.constant 0 : i32
    %c0_i32_0 = arith.constant 0 : i32
    %c0_i32_1 = arith.constant 0 : i32
    return %c0_i32, %c0_i32_0 : i32, i32
  }
  func.func @transform_3(%arg0: i32, %arg1: i32) -> (i32, i32) {
    %c0_i32 = arith.constant 0 : i32
    %c0_i32_0 = arith.constant 0 : i32
    %c0_i32_1 = arith.constant 0 : i32
    return %c0_i32, %c0_i32_0 : i32, i32
  }
  func.func @transform_4(%arg0: i32, %arg1: i32) -> (i32, i32) {
    %c0_i32 = arith.constant 0 : i32
    %c0_i32_0 = arith.constant 0 : i32
    %c0_i32_1 = arith.constant 0 : i32
    return %c0_i32, %c0_i32_0 : i32, i32
  }
  func.func @transform_5(%arg0: i32, %arg1: i32) -> (i32, i32) {
    %c0_i32 = arith.constant 0 : i32
    %c0_i32_0 = arith.constant 0 : i32
    return %arg0, %c0_i32 : i32, i32
  }
}

</mosaic_0001>

<llo_original>
// kernel: tpu_custom_call.1
$region0: #{tpu_custom_call.1}
  #allocation0 [shape = 'u32[]', space=smem, size = 0x4, offset = 0x4, fixed_abs, tag = 'smem constant byte address 0x4 - core index']
  #allocation1 [shape = 'u32[144,128]{1,0:T(1,128)}', space=vmem, size = 0x12000, scoped, tag = 'internal scratch']
  #allocation2 [shape = 'f32[8,128]{1,0:T(8,128)}', space=vmem, size = 0x1000, scoped, tag = 'scratch operand']
  %s0 = inlined_call_operand.hbm [shape: f32[8,1024], index: 0, kind: input, shape index: {}]
  %s1 = inlined_call_operand.hbm [shape: f32[1024,128], index: 1, kind: input, shape index: {}]
  %s2 = inlined_call_operand.vmem [shape: f32[1,128], index: 2, kind: input, shape index: {}]
  %s3 = inlined_call_operand.hbm [shape: f32[128,128], index: 3, kind: input, shape index: {}]
  %s4 = inlined_call_operand.vmem [shape: f32[1,128], index: 4, kind: input, shape index: {}]
  %s5 = inlined_call_operand.hbm [shape: f32[8,128], index: 5, kind: output, shape index: {}]
  %s6 = sld [smem:[#allocation0]]
  $region50: #{tpu_custom_call.1} parent=0
    _
  %s8 = ssub.s32 1, %s6
  %s9 = scalar_select 0, %s8, %s6
  $region1: #{tpu_custom_call.1} parent=0
    #allocation3 [shape = 'u8[32768]{0}', space=vmem, size = 0x8000, scoped, tag = 'input window, operand 0, single buffered']
    #allocation4 [shape = 's32[1]{0}', space=sflag, size = 0x4, scoped, tag = 'scoped memory for tpu_custom_call.1']
    #allocation5 [shape = 's32[1]{0}', space=sflag, size = 0x4, scoped, tag = 'scoped memory for tpu_custom_call.1']
    #allocation6 [shape = 'u8[524288]{0}', space=vmem, size = 0x80000, scoped, tag = 'input window, operand 1, single buffered']
    #allocation7 [shape = 's32[1]{0}', space=sflag, size = 0x4, scoped, tag = 'scoped memory for tpu_custom_call.1']
    #allocation8 [shape = 'u8[65536]{0}', space=vmem, size = 0x10000, scoped, tag = 'input window, operand 3, single buffered']
    #allocation9 [shape = 'u8[4096]{0}', space=vmem, size = 0x1000, scoped, tag = 'output window, operand 0, single buffered']
    %10 = vsyncpa [#allocation4], 0
    %11 = vsyncpa [#allocation7], 0
    %12 = vsyncpa [#allocation5], 0
    // Predicated region
    $region2: #{tpu_custom_call.1} parent=1 // pred_check
      _
    $region3: #{tpu_custom_call.1} parent=1 // pred_check_branch
      %14 = sbr.rel (0) target = $region5
    $region4: #{tpu_custom_call.1} parent=1 // pred_region
      %s16 = ssub.s32 1024, 1024
      %17 = vsyncadd [#allocation4], %s16
      %s19 = sshll.u32 [#allocation3], 4
      %s20 = int_to_ptr.vmem [resolvable:$true] %s19
      %22 = dma.hbm_to_vmem [thread:$0]  %s0, 1024, %s20, [#allocation4]
    $region5: #{tpu_custom_call.1} parent=1 // pred_fallthru
      _
    // Predicated region
    $region6: #{tpu_custom_call.1} parent=1 // pred_check
      _
    $region7: #{tpu_custom_call.1} parent=1 // pred_check_branch
      %24 = sbr.rel (0) target = $region9
    $region8: #{tpu_custom_call.1} parent=1 // pred_region
      %s26 = ssub.s32 16384, 16384
      %27 = vsyncadd [#allocation7], %s26
      %s28 = sshll.u32 [#allocation6], 4
      %s29 = int_to_ptr.vmem [resolvable:$true] %s28
      %34 = dma.hbm_to_vmem [thread:$0]  %s1, 16384, %s29, [#allocation7], 128, 128, 8
    $region9: #{tpu_custom_call.1} parent=1 // pred_fallthru
      _
    // Predicated region
    $region10: #{tpu_custom_call.1} parent=1 // pred_check
      _
    $region11: #{tpu_custom_call.1} parent=1 // pred_check_branch
      %36 = sbr.rel (0) target = $region13
    $region12: #{tpu_custom_call.1} parent=1 // pred_region
      _
    $region13: #{tpu_custom_call.1} parent=1 // pred_fallthru
      _
    // Predicated region
    $region14: #{tpu_custom_call.1} parent=1 // pred_check
      _
    $region15: #{tpu_custom_call.1} parent=1 // pred_check_branch
      %38 = sbr.rel (0) target = $region17
    $region16: #{tpu_custom_call.1} parent=1 // pred_region
      %s40 = ssub.s32 2048, 2048
      %41 = vsyncadd [#allocation7], %s40
      %s42 = sshll.u32 [#allocation8], 4
      %s43 = int_to_ptr.vmem [resolvable:$true] %s42
      %48 = dma.hbm_to_vmem [thread:$0]  %s3, 2048, %s43, [#allocation7], 128, 128, 8
    $region17: #{tpu_custom_call.1} parent=1 // pred_fallthru
      _
    // Predicated region
    $region18: #{tpu_custom_call.1} parent=1 // pred_check
      _
    $region19: #{tpu_custom_call.1} parent=1 // pred_check_branch
      %50 = sbr.rel (0) target = $region21
    $region20: #{tpu_custom_call.1} parent=1 // pred_region
      _
    $region21: #{tpu_custom_call.1} parent=1 // pred_fallthru
      _
    // Predicated region
    $region22: #{tpu_custom_call.1} parent=1 // pred_check
      _
    $region23: #{tpu_custom_call.1} parent=1 // pred_check_branch
      %52 = sbr.rel (0) target = $region25
    $region24: #{tpu_custom_call.1} parent=1 // pred_region
      %53 = dma.done [#allocation4], 1024
    $region25: #{tpu_custom_call.1} parent=1 // pred_fallthru
      _
    // Predicated region
    $region26: #{tpu_custom_call.1} parent=1 // pred_check
      _
    $region27: #{tpu_custom_call.1} parent=1 // pred_check_branch
      %55 = sbr.rel (0) target = $region29
    $region28: #{tpu_custom_call.1} parent=1 // pred_region
      %56 = dma.done [#allocation7], 16384
    $region29: #{tpu_custom_call.1} parent=1 // pred_fallthru
      _
    // Predicated region
    $region30: #{tpu_custom_call.1} parent=1 // pred_check
      _
    $region31: #{tpu_custom_call.1} parent=1 // pred_check_branch
      %58 = sbr.rel (0) target = $region33
    $region32: #{tpu_custom_call.1} parent=1 // pred_region
      %59 = dma.done [#allocation7], 2048
    $region33: #{tpu_custom_call.1} parent=1 // pred_fallthru
      _
    %p60 = scmp.eq.s32.totalorder 0, 0
    // Predicated region
    $region34: #{tpu_custom_call.1} parent=1 // pred_check
      %p61 = pneg %p60
    $region35: #{tpu_custom_call.1} parent=1 // pred_check_branch
      %63 = sbr.rel (%p61) target = $region37
    $region36: #{tpu_custom_call.1} parent=1 // pred_region
      %v64 = vld [vmem:[%s2] sm:$0x1]
      %v66 = vlaneseq
      %v67 = vshrl.u32 %v66, 7
      %v68 = vsub.s32 0, %v67
      %v69 = vrot.slane %v64, %v68
      %71 = vst [vmem:[#allocation2] sm:$0xff] %v69
    $region37: #{tpu_custom_call.1} parent=1 // pred_fallthru
      _
    %s72 = smul.u32 0, 1024
    %v73 = vld [vmem:[#allocation3] sm:$0xff]
    %v74 = vld [vmem:[#allocation3 + $0x8] sm:$0xff]
    %v75 = vld [vmem:[#allocation3 + $0x10] sm:$0xff]
    %v76 = vld [vmem:[#allocation3 + $0x18] sm:$0xff]
    %v77 = vld [vmem:[#allocation3 + $0x20] sm:$0xff]
    %v78 = vld [vmem:[#allocation3 + $0x28] sm:$0xff]
    %v79 = vld [vmem:[#allocation3 + $0x30] sm:$0xff]
    %v80 = vld [vmem:[#allocation3 + $0x38] sm:$0xff]
    %s81 = scalar_lea.vmem [#allocation6], %s72
    %v82 = vld [vmem:[%s81] sm:$0xff]
    %v83 = vld [vmem:[%s81 + $0x8] sm:$0xff]
    %v84 = vld [vmem:[%s81 + $0x10] sm:$0xff]
    %v85 = vld [vmem:[%s81 + $0x18] sm:$0xff]
    %v86 = vld [vmem:[%s81 + $0x20] sm:$0xff]
    %v87 = vld [vmem:[%s81 + $0x28] sm:$0xff]
    %v88 = vld [vmem:[%s81 + $0x30] sm:$0xff]
    %v89 = vld [vmem:[%s81 + $0x38] sm:$0xff]
    %v90 = vld [vmem:[%s81 + $0x40] sm:$0xff]
    %v91 = vld [vmem:[%s81 + $0x48] sm:$0xff]
    %v92 = vld [vmem:[%s81 + $0x50] sm:$0xff]
    %v93 = vld [vmem:[%s81 + $0x58] sm:$0xff]
    %v94 = vld [vmem:[%s81 + $0x60] sm:$0xff]
    %v95 = vld [vmem:[%s81 + $0x68] sm:$0xff]
    %v96 = vld [vmem:[%s81 + $0x70] sm:$0xff]
    %v97 = vld [vmem:[%s81 + $0x78] sm:$0xff]
    %v98 = vld [vmem:[%s81 + $0x80] sm:$0xff]
    %v99 = vld [vmem:[%s81 + $0x88] sm:$0xff]
    %v100 = vld [vmem:[%s81 + $0x90] sm:$0xff]
    %v101 = vld [vmem:[%s81 + $0x98] sm:$0xff]
    %v102 = vld [vmem:[%s81 + $0xa0] sm:$0xff]
    %v103 = vld [vmem:[%s81 + $0xa8] sm:$0xff]
    %v104 = vld [vmem:[%s81 + $0xb0] sm:$0xff]
    %v105 = vld [vmem:[%s81 + $0xb8] sm:$0xff]
    %v106 = vld [vmem:[%s81 + $0xc0] sm:$0xff]
    %v107 = vld [vmem:[%s81 + $0xc8] sm:$0xff]
    %v108 = vld [vmem:[%s81 + $0xd0] sm:$0xff]
    %v109 = vld [vmem:[%s81 + $0xd8] sm:$0xff]
    %v110 = vld [vmem:[%s81 + $0xe0] sm:$0xff]
    %v111 = vld [vmem:[%s81 + $0xe8] sm:$0xff]
    %v112 = vld [vmem:[%s81 + $0xf0] sm:$0xff]
    %v113 = vld [vmem:[%s81 + $0xf8] sm:$0xff]
    %v114 = vld [vmem:[%s81 + $0x100] sm:$0xff]
    %v115 = vld [vmem:[%s81 + $0x108] sm:$0xff]
    %v116 = vld [vmem:[%s81 + $0x110] sm:$0xff]
    %v117 = vld [vmem:[%s81 + $0x118] sm:$0xff]
    %v118 = vld [vmem:[%s81 + $0x120] sm:$0xff]
    %v119 = vld [vmem:[%s81 + $0x128] sm:$0xff]
    %v120 = vld [vmem:[%s81 + $0x130] sm:$0xff]
    %v121 = vld [vmem:[%s81 + $0x138] sm:$0xff]
    %v122 = vld [vmem:[%s81 + $0x140] sm:$0xff]
    %v123 = vld [vmem:[%s81 + $0x148] sm:$0xff]
    %v124 = vld [vmem:[%s81 + $0x150] sm:$0xff]
    %v125 = vld [vmem:[%s81 + $0x158] sm:$0xff]
    %v126 = vld [vmem:[%s81 + $0x160] sm:$0xff]
    %v127 = vld [vmem:[%s81 + $0x168] sm:$0xff]
    %v128 = vld [vmem:[%s81 + $0x170] sm:$0xff]
    %v129 = vld [vmem:[%s81 + $0x178] sm:$0xff]
    %v130 = vld [vmem:[%s81 + $0x180] sm:$0xff]
    %v131 = vld [vmem:[%s81 + $0x188] sm:$0xff]
    %v132 = vld [vmem:[%s81 + $0x190] sm:$0xff]
    %v133 = vld [vmem:[%s81 + $0x198] sm:$0xff]
    %v134 = vld [vmem:[%s81 + $0x1a0] sm:$0xff]
    %v135 = vld [vmem:[%s81 + $0x1a8] sm:$0xff]
    %v136 = vld [vmem:[%s81 + $0x1b0] sm:$0xff]
    %v137 = vld [vmem:[%s81 + $0x1b8] sm:$0xff]
    %v138 = vld [vmem:[%s81 + $0x1c0] sm:$0xff]
    %v139 = vld [vmem:[%s81 + $0x1c8] sm:$0xff]
    %v140 = vld [vmem:[%s81 + $0x1d0] sm:$0xff]
    %v141 = vld [vmem:[%s81 + $0x1d8] sm:$0xff]
    %v142 = vld [vmem:[%s81 + $0x1e0] sm:$0xff]
    %v143 = vld [vmem:[%s81 + $0x1e8] sm:$0xff]
    %v144 = vld [vmem:[%s81 + $0x1f0] sm:$0xff]
    %v145 = vld [vmem:[%s81 + $0x1f8] sm:$0xff]
    %v146 = vld [vmem:[%s81 + $0x200] sm:$0xff]
    %v147 = vld [vmem:[%s81 + $0x208] sm:$0xff]
    %v148 = vld [vmem:[%s81 + $0x210] sm:$0xff]
    %v149 = vld [vmem:[%s81 + $0x218] sm:$0xff]
    %v150 = vld [vmem:[%s81 + $0x220] sm:$0xff]
    %v151 = vld [vmem:[%s81 + $0x228] sm:$0xff]
    %v152 = vld [vmem:[%s81 + $0x230] sm:$0xff]
    %v153 = vld [vmem:[%s81 + $0x238] sm:$0xff]
    %v154 = vld [vmem:[%s81 + $0x240] sm:$0xff]
    %v155 = vld [vmem:[%s81 + $0x248] sm:$0xff]
    %v156 = vld [vmem:[%s81 + $0x250] sm:$0xff]
    %v157 = vld [vmem:[%s81 + $0x258] sm:$0xff]
    %v158 = vld [vmem:[%s81 + $0x260] sm:$0xff]
    %v159 = vld [vmem:[%s81 + $0x268] sm:$0xff]
    %v160 = vld [vmem:[%s81 + $0x270] sm:$0xff]
    %v161 = vld [vmem:[%s81 + $0x278] sm:$0xff]
    %v162 = vld [vmem:[%s81 + $0x280] sm:$0xff]
    %v163 = vld [vmem:[%s81 + $0x288] sm:$0xff]
    %v164 = vld [vmem:[%s81 + $0x290] sm:$0xff]
    %v165 = vld [vmem:[%s81 + $0x298] sm:$0xff]
    %v166 = vld [vmem:[%s81 + $0x2a0] sm:$0xff]
    %v167 = vld [vmem:[%s81 + $0x2a8] sm:$0xff]
    %v168 = vld [vmem:[%s81 + $0x2b0] sm:$0xff]
    %v169 = vld [vmem:[%s81 + $0x2b8] sm:$0xff]
    %v170 = vld [vmem:[%s81 + $0x2c0] sm:$0xff]
    %v171 = vld [vmem:[%s81 + $0x2c8] sm:$0xff]
    %v172 = vld [vmem:[%s81 + $0x2d0] sm:$0xff]
    %v173 = vld [vmem:[%s81 + $0x2d8] sm:$0xff]
    %v174 = vld [vmem:[%s81 + $0x2e0] sm:$0xff]
    %v175 = vld [vmem:[%s81 + $0x2e8] sm:$0xff]
    %v176 = vld [vmem:[%s81 + $0x2f0] sm:$0xff]
    %v177 = vld [vmem:[%s81 + $0x2f8] sm:$0xff]
    %v178 = vld [vmem:[%s81 + $0x300] sm:$0xff]
    %v179 = vld [vmem:[%s81 + $0x308] sm:$0xff]
    %v180 = vld [vmem:[%s81 + $0x310] sm:$0xff]
    %v181 = vld [vmem:[%s81 + $0x318] sm:$0xff]
    %v182 = vld [vmem:[%s81 + $0x320] sm:$0xff]
    %v183 = vld [vmem:[%s81 + $0x328] sm:$0xff]
    %v184 = vld [vmem:[%s81 + $0x330] sm:$0xff]
    %v185 = vld [vmem:[%s81 + $0x338] sm:$0xff]
    %v186 = vld [vmem:[%s81 + $0x340] sm:$0xff]
    %v187 = vld [vmem:[%s81 + $0x348] sm:$0xff]
    %v188 = vld [vmem:[%s81 + $0x350] sm:$0xff]
    %v189 = vld [vmem:[%s81 + $0x358] sm:$0xff]
    %v190 = vld [vmem:[%s81 + $0x360] sm:$0xff]
    %v191 = vld [vmem:[%s81 + $0x368] sm:$0xff]
    %v192 = vld [vmem:[%s81 + $0x370] sm:$0xff]
    %v193 = vld [vmem:[%s81 + $0x378] sm:$0xff]
    %v194 = vld [vmem:[%s81 + $0x380] sm:$0xff]
    %v195 = vld [vmem:[%s81 + $0x388] sm:$0xff]
    %v196 = vld [vmem:[%s81 + $0x390] sm:$0xff]
    %v197 = vld [vmem:[%s81 + $0x398] sm:$0xff]
    %v198 = vld [vmem:[%s81 + $0x3a0] sm:$0xff]
    %v199 = vld [vmem:[%s81 + $0x3a8] sm:$0xff]
    %v200 = vld [vmem:[%s81 + $0x3b0] sm:$0xff]
    %v201 = vld [vmem:[%s81 + $0x3b8] sm:$0xff]
    %v202 = vld [vmem:[%s81 + $0x3c0] sm:$0xff]
    %v203 = vld [vmem:[%s81 + $0x3c8] sm:$0xff]
    %v204 = vld [vmem:[%s81 + $0x3d0] sm:$0xff]
    %v205 = vld [vmem:[%s81 + $0x3d8] sm:$0xff]
    %v206 = vld [vmem:[%s81 + $0x3e0] sm:$0xff]
    %v207 = vld [vmem:[%s81 + $0x3e8] sm:$0xff]
    %v208 = vld [vmem:[%s81 + $0x3f0] sm:$0xff]
    %v209 = vld [vmem:[%s81 + $0x3f8] sm:$0xff]
    %v210 = vld [vmem:[#allocation2] sm:$0xff]
    %211 = vmatprep.subr.mxu0 0.0
    %212 = vmatpush1.msra.mxu0 %v82
    %213 = vmatprep.subr.mxu0 0.0
    %214 = vmatpush1.msra.mxu0 %v83
    %215 = vmatprep.subr.mxu0 0.0
    %216 = vmatpush1.msra.mxu0 %v84
    %217 = vmatprep.subr.mxu0 0.0
    %218 = vmatpush1.msra.mxu0 %v85
    %219 = vmatprep.subr.mxu0 0.0
    %220 = vmatpush1.msra.mxu0 %v86
    %221 = vmatprep.subr.mxu0 0.0
    %222 = vmatpush1.msra.mxu0 %v87
    %223 = vmatprep.subr.mxu0 0.0
    %224 = vmatpush1.msra.mxu0 %v88
    %225 = vmatprep.subr.mxu0 0.0
    %226 = vmatpush1.msra.mxu0 %v89
    %227 = vmatprep.subr.mxu0 0.0
    %228 = vmatpush1.msra.mxu0 %v90
    %229 = vmatprep.subr.mxu0 0.0
    %230 = vmatpush1.msra.mxu0 %v91
    %231 = vmatprep.subr.mxu0 0.0
    %232 = vmatpush1.msra.mxu0 %v92
    %233 = vmatprep.subr.mxu0 0.0
    %234 = vmatpush1.msra.mxu0 %v93
    %235 = vmatprep.subr.mxu0 0.0
    %236 = vmatpush1.msra.mxu0 %v94
    %237 = vmatprep.subr.mxu0 0.0
    %238 = vmatpush1.msra.mxu0 %v95
    %239 = vmatprep.subr.mxu0 0.0
    %240 = vmatpush1.msra.mxu0 %v96
    %241 = vmatprep.subr.mxu0 0.0
    %242 = vmatpush1.msra.mxu0 %v97
    %243 = vmatprep.subr.mxu0 0.0
    %244 = vmatpush1.msra.mxu0 %v98
    %245 = vmatprep.subr.mxu0 0.0
    %246 = vmatpush1.msra.mxu0 %v99
    %247 = vmatprep.subr.mxu0 0.0
    %248 = vmatpush1.msra.mxu0 %v100
    %249 = vmatprep.subr.mxu0 0.0
    %250 = vmatpush1.msra.mxu0 %v101
    %251 = vmatprep.subr.mxu0 0.0
    %252 = vmatpush1.msra.mxu0 %v102
    %253 = vmatprep.subr.mxu0 0.0
    %254 = vmatpush1.msra.mxu0 %v103
    %255 = vmatprep.subr.mxu0 0.0
    %256 = vmatpush1.msra.mxu0 %v104
    %257 = vmatprep.subr.mxu0 0.0
    %258 = vmatpush1.msra.mxu0 %v105
    %259 = vmatprep.subr.mxu0 0.0
    %260 = vmatpush1.msra.mxu0 %v106
    %261 = vmatprep.subr.mxu0 0.0
    %262 = vmatpush1.msra.mxu0 %v107
    %263 = vmatprep.subr.mxu0 0.0
    %264 = vmatpush1.msra.mxu0 %v108
    %265 = vmatprep.subr.mxu0 0.0
    %266 = vmatpush1.msra.mxu0 %v109
    %267 = vmatprep.subr.mxu0 0.0
    %268 = vmatpush1.msra.mxu0 %v110
    %269 = vmatprep.subr.mxu0 0.0
    %270 = vmatpush1.msra.mxu0 %v111
    %271 = vmatprep.subr.mxu0 0.0
    %272 = vmatpush1.msra.mxu0 %v112
    %273 = vmatprep.subr.mxu0 0.0
    %274 = vmatpush1.msra.mxu0 %v113
    %275 = vmatprep.mubr.f32.mxu0 %v74
    %276 = vmatmul.mubr.f32.gmra.mrb[0].mxu0 %v73
    %v277 = vpop.f32.mrb[0].mxu0
    %v278 = vadd.f32 0.0, %v277
    %v279 = vpop.f32.mrb[0].mxu0
    %280 = vdwg.mxu0
    %281 = vmatprep.subr.mxu0 0.0
    %282 = vmatpush1.msra.mxu0 %v114
    %283 = vmatprep.subr.mxu0 0.0
    %284 = vmatpush1.msra.mxu0 %v115
    %285 = vmatprep.subr.mxu0 0.0
    %286 = vmatpush1.msra.mxu0 %v116
    %287 = vmatprep.subr.mxu0 0.0
    %288 = vmatpush1.msra.mxu0 %v117
    %289 = vmatprep.subr.mxu0 0.0
    %290 = vmatpush1.msra.mxu0 %v118
    %291 = vmatprep.subr.mxu0 0.0
    %292 = vmatpush1.msra.mxu0 %v119
    %293 = vmatprep.subr.mxu0 0.0
    %294 = vmatpush1.msra.mxu0 %v120
    %295 = vmatprep.subr.mxu0 0.0
    %296 = vmatpush1.msra.mxu0 %v121
    %297 = vmatprep.subr.mxu0 0.0
    %298 = vmatpush1.msra.mxu0 %v122
    %299 = vmatprep.subr.mxu0 0.0
    %300 = vmatpush1.msra.mxu0 %v123
    %301 = vmatprep.subr.mxu0 0.0
    %302 = vmatpush1.msra.mxu0 %v124
    %303 = vmatprep.subr.mxu0 0.0
    %304 = vmatpush1.msra.mxu0 %v125
    %305 = vmatprep.subr.mxu0 0.0
    %306 = vmatpush1.msra.mxu0 %v126
    %307 = vmatprep.subr.mxu0 0.0
    %308 = vmatpush1.msra.mxu0 %v127
    %309 = vmatprep.subr.mxu0 0.0
    %310 = vmatpush1.msra.mxu0 %v128
    %311 = vmatprep.subr.mxu0 0.0
    %312 = vmatpush1.msra.mxu0 %v129
    %313 = vmatprep.subr.mxu0 0.0
    %314 = vmatpush1.msra.mxu0 %v130
    %315 = vmatprep.subr.mxu0 0.0
    %316 = vmatpush1.msra.mxu0 %v131
    %317 = vmatprep.subr.mxu0 0.0
    %318 = vmatpush1.msra.mxu0 %v132
    %319 = vmatprep.subr.mxu0 0.0
    %320 = vmatpush1.msra.mxu0 %v133
    %321 = vmatprep.subr.mxu0 0.0
    %322 = vmatpush1.msra.mxu0 %v134
    %323 = vmatprep.subr.mxu0 0.0
    %324 = vmatpush1.msra.mxu0 %v135
    %325 = vmatprep.subr.mxu0 0.0
    %326 = vmatpush1.msra.mxu0 %v136
    %327 = vmatprep.subr.mxu0 0.0
    %328 = vmatpush1.msra.mxu0 %v137
    %329 = vmatprep.subr.mxu0 0.0
    %330 = vmatpush1.msra.mxu0 %v138
    %331 = vmatprep.subr.mxu0 0.0
    %332 = vmatpush1.msra.mxu0 %v139
    %333 = vmatprep.subr.mxu0 0.0
    %334 = vmatpush1.msra.mxu0 %v140
    %335 = vmatprep.subr.mxu0 0.0
    %336 = vmatpush1.msra.mxu0 %v141
    %337 = vmatprep.subr.mxu0 0.0
    %338 = vmatpush1.msra.mxu0 %v142
    %339 = vmatprep.subr.mxu0 0.0
    %340 = vmatpush1.msra.mxu0 %v143
    %341 = vmatprep.subr.mxu0 0.0
    %342 = vmatpush1.msra.mxu0 %v144
    %343 = vmatprep.subr.mxu0 0.0
    %344 = vmatpush1.msra.mxu0 %v145
    %345 = vmatprep.mubr.f32.mxu0 %v76
    %346 = vmatmul.mubr.f32.gmra.mrb[0].mxu0 %v75
    %v347 = vpop.f32.mrb[0].mxu0
    %v348 = vadd.f32 %v278, %v347
    %v349 = vpop.f32.mrb[0].mxu0
    %350 = vdwg.mxu0
    %351 = vmatprep.subr.mxu0 0.0
    %352 = vmatpush1.msra.mxu0 %v146
    %353 = vmatprep.subr.mxu0 0.0
    %354 = vmatpush1.msra.mxu0 %v147
    %355 = vmatprep.subr.mxu0 0.0
    %356 = vmatpush1.msra.mxu0 %v148
    %357 = vmatprep.subr.mxu0 0.0
    %358 = vmatpush1.msra.mxu0 %v149
    %359 = vmatprep.subr.mxu0 0.0
    %360 = vmatpush1.msra.mxu0 %v150
    %361 = vmatprep.subr.mxu0 0.0
    %362 = vmatpush1.msra.mxu0 %v151
    %363 = vmatprep.subr.mxu0 0.0
    %364 = vmatpush1.msra.mxu0 %v152
    %365 = vmatprep.subr.mxu0 0.0
    %366 = vmatpush1.msra.mxu0 %v153
    %367 = vmatprep.subr.mxu0 0.0
    %368 = vmatpush1.msra.mxu0 %v154
    %369 = vmatprep.subr.mxu0 0.0
    %370 = vmatpush1.msra.mxu0 %v155
    %371 = vmatprep.subr.mxu0 0.0
    %372 = vmatpush1.msra.mxu0 %v156
    %373 = vmatprep.subr.mxu0 0.0
    %374 = vmatpush1.msra.mxu0 %v157
    %375 = vmatprep.subr.mxu0 0.0
    %376 = vmatpush1.msra.mxu0 %v158
    %377 = vmatprep.subr.mxu0 0.0
    %378 = vmatpush1.msra.mxu0 %v159
    %379 = vmatprep.subr.mxu0 0.0
    %380 = vmatpush1.msra.mxu0 %v160
    %381 = vmatprep.subr.mxu0 0.0
    %382 = vmatpush1.msra.mxu0 %v161
    %383 = vmatprep.subr.mxu0 0.0
    %384 = vmatpush1.msra.mxu0 %v162
    %385 = vmatprep.subr.mxu0 0.0
    %386 = vmatpush1.msra.mxu0 %v163
    %387 = vmatprep.subr.mxu0 0.0
    %388 = vmatpush1.msra.mxu0 %v164
    %389 = vmatprep.subr.mxu0 0.0
    %390 = vmatpush1.msra.mxu0 %v165
    %391 = vmatprep.subr.mxu0 0.0
    %392 = vmatpush1.msra.mxu0 %v166
    %393 = vmatprep.subr.mxu0 0.0
    %394 = vmatpush1.msra.mxu0 %v167
    %395 = vmatprep.subr.mxu0 0.0
    %396 = vmatpush1.msra.mxu0 %v168
    %397 = vmatprep.subr.mxu0 0.0
    %398 = vmatpush1.msra.mxu0 %v169
    %399 = vmatprep.subr.mxu0 0.0
    %400 = vmatpush1.msra.mxu0 %v170
    %401 = vmatprep.subr.mxu0 0.0
    %402 = vmatpush1.msra.mxu0 %v171
    %403 = vmatprep.subr.mxu0 0.0
    %404 = vmatpush1.msra.mxu0 %v172
    %405 = vmatprep.subr.mxu0 0.0
    %406 = vmatpush1.msra.mxu0 %v173
    %407 = vmatprep.subr.mxu0 0.0
    %408 = vmatpush1.msra.mxu0 %v174
    %409 = vmatprep.subr.mxu0 0.0
    %410 = vmatpush1.msra.mxu0 %v175
    %411 = vmatprep.subr.mxu0 0.0
    %412 = vmatpush1.msra.mxu0 %v176
    %413 = vmatprep.subr.mxu0 0.0
    %414 = vmatpush1.msra.mxu0 %v177
    %415 = vmatprep.mubr.f32.mxu0 %v78
    %416 = vmatmul.mubr.f32.gmra.mrb[0].mxu0 %v77
    %v417 = vpop.f32.mrb[0].mxu0
    %v418 = vadd.f32 %v348, %v417
    %v419 = vpop.f32.mrb[0].mxu0
    %420 = vdwg.mxu0
    %421 = vmatprep.subr.mxu0 0.0
    %422 = vmatpush1.msra.mxu0 %v178
    %423 = vmatprep.subr.mxu0 0.0
    %424 = vmatpush1.msra.mxu0 %v179
    %425 = vmatprep.subr.mxu0 0.0
    %426 = vmatpush1.msra.mxu0 %v180
    %427 = vmatprep.subr.mxu0 0.0
    %428 = vmatpush1.msra.mxu0 %v181
    %429 = vmatprep.subr.mxu0 0.0
    %430 = vmatpush1.msra.mxu0 %v182
    %431 = vmatprep.subr.mxu0 0.0
    %432 = vmatpush1.msra.mxu0 %v183
    %433 = vmatprep.subr.mxu0 0.0
    %434 = vmatpush1.msra.mxu0 %v184
    %435 = vmatprep.subr.mxu0 0.0
    %436 = vmatpush1.msra.mxu0 %v185
    %437 = vmatprep.subr.mxu0 0.0
    %438 = vmatpush1.msra.mxu0 %v186
    %439 = vmatprep.subr.mxu0 0.0
    %440 = vmatpush1.msra.mxu0 %v187
    %441 = vmatprep.subr.mxu0 0.0
    %442 = vmatpush1.msra.mxu0 %v188
    %443 = vmatprep.subr.mxu0 0.0
    %444 = vmatpush1.msra.mxu0 %v189
    %445 = vmatprep.subr.mxu0 0.0
    %446 = vmatpush1.msra.mxu0 %v190
    %447 = vmatprep.subr.mxu0 0.0
    %448 = vmatpush1.msra.mxu0 %v191
    %449 = vmatprep.subr.mxu0 0.0
    %450 = vmatpush1.msra.mxu0 %v192
    %451 = vmatprep.subr.mxu0 0.0
    %452 = vmatpush1.msra.mxu0 %v193
    %453 = vmatprep.subr.mxu0 0.0
    %454 = vmatpush1.msra.mxu0 %v194
    %455 = vmatprep.subr.mxu0 0.0
    %456 = vmatpush1.msra.mxu0 %v195
    %457 = vmatprep.subr.mxu0 0.0
    %458 = vmatpush1.msra.mxu0 %v196
    %459 = vmatprep.subr.mxu0 0.0
    %460 = vmatpush1.msra.mxu0 %v197
    %461 = vmatprep.subr.mxu0 0.0
    %462 = vmatpush1.msra.mxu0 %v198
    %463 = vmatprep.subr.mxu0 0.0
    %464 = vmatpush1.msra.mxu0 %v199
    %465 = vmatprep.subr.mxu0 0.0
    %466 = vmatpush1.msra.mxu0 %v200
    %467 = vmatprep.subr.mxu0 0.0
    %468 = vmatpush1.msra.mxu0 %v201
    %469 = vmatprep.subr.mxu0 0.0
    %470 = vmatpush1.msra.mxu0 %v202
    %471 = vmatprep.subr.mxu0 0.0
    %472 = vmatpush1.msra.mxu0 %v203
    %473 = vmatprep.subr.mxu0 0.0
    %474 = vmatpush1.msra.mxu0 %v204
    %475 = vmatprep.subr.mxu0 0.0
    %476 = vmatpush1.msra.mxu0 %v205
    %477 = vmatprep.subr.mxu0 0.0
    %478 = vmatpush1.msra.mxu0 %v206
    %479 = vmatprep.subr.mxu0 0.0
    %480 = vmatpush1.msra.mxu0 %v207
    %481 = vmatprep.subr.mxu0 0.0
    %482 = vmatpush1.msra.mxu0 %v208
    %483 = vmatprep.subr.mxu0 0.0
    %484 = vmatpush1.msra.mxu0 %v209
    %485 = vmatprep.mubr.f32.mxu0 %v80
    %486 = vmatmul.mubr.f32.gmra.mrb[0].mxu0 %v79
    %v487 = vpop.f32.mrb[0].mxu0
    %v488 = vadd.f32 %v418, %v487
    %v489 = vpop.f32.mrb[0].mxu0
    %490 = vdwg.mxu0
    %v491 = vadd.f32 %v210, %v488
    %492 = vst [vmem:[#allocation2] sm:$0xff] %v491
    // Predicated region
    $region38: #{tpu_custom_call.1} parent=1 // pred_check
      %p493 = pneg %p60
    $region39: #{tpu_custom_call.1} parent=1 // pred_check_branch
      %495 = sbr.rel (%p493) target = $region41
    $region40: #{tpu_custom_call.1} parent=1 // pred_region
      %v496 = vld [vmem:[#allocation2] sm:$0xff]
      %v497 = vmax.f32 %v496, 0.0
      %v498 = vld [vmem:[#allocation8] sm:$0xff]
      %v499 = vld [vmem:[#allocation8 + $0x8] sm:$0xff]
      %v500 = vld [vmem:[#allocation8 + $0x10] sm:$0xff]
      %v501 = vld [vmem:[#allocation8 + $0x18] sm:$0xff]
      %v502 = vld [vmem:[#allocation8 + $0x20] sm:$0xff]
      %v503 = vld [vmem:[#allocation8 + $0x28] sm:$0xff]
      %v504 = vld [vmem:[#allocation8 + $0x30] sm:$0xff]
      %v505 = vld [vmem:[#allocation8 + $0x38] sm:$0xff]
      %v506 = vld [vmem:[#allocation8 + $0x40] sm:$0xff]
      %v507 = vld [vmem:[#allocation8 + $0x48] sm:$0xff]
      %v508 = vld [vmem:[#allocation8 + $0x50] sm:$0xff]
      %v509 = vld [vmem:[#allocation8 + $0x58] sm:$0xff]
      %v510 = vld [vmem:[#allocation8 + $0x60] sm:$0xff]
      %v511 = vld [vmem:[#allocation8 + $0x68] sm:$0xff]
      %v512 = vld [vmem:[#allocation8 + $0x70] sm:$0xff]
      %v513 = vld [vmem:[#allocation8 + $0x78] sm:$0xff]
      %v514 = vld [vmem:[%s4] sm:$0x1]
      %v516 = vlaneseq
      %v517 = vshrl.u32 %v516, 7
      %v518 = vsub.s32 0, %v517
      %v519 = vrot.slane %v514, %v518
      %521 = vmatprep.subr.mxu0 0.0
      %522 = vmatpush1.msra.mxu0 %v498
      %523 = vmatprep.subr.mxu0 0.0
      %524 = vmatpush1.msra.mxu0 %v499
      %525 = vmatprep.subr.mxu0 0.0
      %526 = vmatpush1.msra.mxu0 %v500
      %527 = vmatprep.subr.mxu0 0.0
      %528 = vmatpush1.msra.mxu0 %v501
      %529 = vmatprep.subr.mxu0 0.0
      %530 = vmatpush1.msra.mxu0 %v502
      %531 = vmatprep.subr.mxu0 0.0
      %532 = vmatpush1.msra.mxu0 %v503
      %533 = vmatprep.subr.mxu0 0.0
      %534 = vmatpush1.msra.mxu0 %v504
      %535 = vmatprep.subr.mxu0 0.0
      %536 = vmatpush1.msra.mxu0 %v505
      %537 = vmatprep.subr.mxu0 0.0
      %538 = vmatpush1.msra.mxu0 %v506
      %539 = vmatprep.subr.mxu0 0.0
      %540 = vmatpush1.msra.mxu0 %v507
      %541 = vmatprep.subr.mxu0 0.0
      %542 = vmatpush1.msra.mxu0 %v508
      %543 = vmatprep.subr.mxu0 0.0
      %544 = vmatpush1.msra.mxu0 %v509
      %545 = vmatprep.subr.mxu0 0.0
      %546 = vmatpush1.msra.mxu0 %v510
      %547 = vmatprep.subr.mxu0 0.0
      %548 = vmatpush1.msra.mxu0 %v511
      %549 = vmatprep.subr.mxu0 0.0
      %550 = vmatpush1.msra.mxu0 %v512
      %551 = vmatprep.subr.mxu0 0.0
      %552 = vmatpush1.msra.mxu0 %v513
      %553 = vmatprep.subr.mxu0 0.0
      %554 = vmatpush1.msra.mxu0 0.0
      %555 = vmatprep.subr.mxu0 0.0
      %556 = vmatpush1.msra.mxu0 0.0
      %557 = vmatprep.subr.mxu0 0.0
      %558 = vmatpush1.msra.mxu0 0.0
      %559 = vmatprep.subr.mxu0 0.0
      %560 = vmatpush1.msra.mxu0 0.0
      %561 = vmatprep.subr.mxu0 0.0
      %562 = vmatpush1.msra.mxu0 0.0
      %563 = vmatprep.subr.mxu0 0.0
      %564 = vmatpush1.msra.mxu0 0.0
      %565 = vmatprep.subr.mxu0 0.0
      %566 = vmatpush1.msra.mxu0 0.0
      %567 = vmatprep.subr.mxu0 0.0
      %568 = vmatpush1.msra.mxu0 0.0
      %569 = vmatprep.subr.mxu0 0.0
      %570 = vmatpush1.msra.mxu0 0.0
      %571 = vmatprep.subr.mxu0 0.0
      %572 = vmatpush1.msra.mxu0 0.0
      %573 = vmatprep.subr.mxu0 0.0
      %574 = vmatpush1.msra.mxu0 0.0
      %575 = vmatprep.subr.mxu0 0.0
      %576 = vmatpush1.msra.mxu0 0.0
      %577 = vmatprep.subr.mxu0 0.0
      %578 = vmatpush1.msra.mxu0 0.0
      %579 = vmatprep.subr.mxu0 0.0
      %580 = vmatpush1.msra.mxu0 0.0
      %581 = vmatprep.subr.mxu0 0.0
      %582 = vmatpush1.msra.mxu0 0.0
      %583 = vmatprep.subr.mxu0 0.0
      %584 = vmatpush1.msra.mxu0 0.0
      %585 = vmatprep.mubr.f32.mxu0 0.0
      %586 = vmatmul.mubr.f32.gmra.mrb[0].mxu0 %v497
      %v587 = vpop.f32.mrb[0].mxu0
      %v588 = vadd.f32 %v519, %v587
      %v589 = vpop.f32.mrb[0].mxu0
      %590 = vdwg.mxu0
      %591 = vst [vmem:[#allocation9] sm:$0xff] %v588
    $region41: #{tpu_custom_call.1} parent=1 // pred_fallthru
      _
    // Predicated region
    $region42: #{tpu_custom_call.1} parent=1 // pred_check
      _
    $region43: #{tpu_custom_call.1} parent=1 // pred_check_branch
      %593 = sbr.rel (0) target = $region45
    $region44: #{tpu_custom_call.1} parent=1 // pred_region
      %s595 = ssub.s32 128, 128
      %596 = vsyncadd [#allocation5], %s595
      %s598 = sshll.u32 [#allocation9], 4
      %s599 = int_to_ptr.vmem [resolvable:$true] %s598
      %601 = dma.vmem_to_hbm [thread:$0]  %s599, 128, %s5, [#allocation5]
    $region45: #{tpu_custom_call.1} parent=1 // pred_fallthru
      _
    // Predicated region
    $region46: #{tpu_custom_call.1} parent=1 // pred_check
      _
    $region47: #{tpu_custom_call.1} parent=1 // pred_check_branch
      %603 = sbr.rel (0) target = $region49
    $region48: #{tpu_custom_call.1} parent=1 // pred_region
      %604 = dma.done [#allocation5], 128
    $region49: #{tpu_custom_call.1} parent=1 // pred_fallthru
      _
    %605 = vsyncpa [#allocation4], 1
    %606 = vsyncpa [#allocation7], 1
    %607 = vsyncpa [#allocation5], 1

</llo_original>
